<compile_context>
chip_gen: v5e
topology: v5e:2x2
jax: 0.10.0
libtpu: 0.0.40
codegen_flags: <defaults>
</compile_context>

<pallas_src>
import jax
import jax.numpy as jnp
from jax.experimental import pallas as pl
from jax.experimental.pallas import tpu as pltpu


def mse_sum_kernel(xr_ref, x_ref, out_ref):
    """Accumulate (x_recon - x)^2 into a resident (8, lane) f32 output block.

    Grid = (num_parallel, steps); the output block index depends only on the
    parallel axis, so the block stays resident across the inner "arbitrary"
    axis and acts as the accumulator.  The per-step reduction is only over
    groups of 8 rows (whole-vreg VPU adds) -- no cross-lane reduce in the hot
    loop.
    """
    s = pl.program_id(1)

    @pl.when(s == 0)
    def _init():
        out_ref[...] = jnp.zeros_like(out_ref)

    diff = xr_ref[...].astype(jnp.float32) - x_ref[...].astype(jnp.float32)
    sq = diff * diff
    r, l = sq.shape
    # (r, l) -> (r // 8, 8, l) is a leading-dim split (layout preserving);
    # summing axis 0 is plain vreg-to-vreg adds on the VPU.
    out_ref[...] += jnp.sum(sq.reshape(r // 8, 8, l), axis=0)


def _default_num_parallel():
    """2 on dual-TensorCore chips (v7x), else 1 (v5e / v6e single TC)."""
    try:
        kind = jax.devices()[0].device_kind.lower()
    except Exception:
        return 1
    return 2 if "v7" in kind else 1


def _mse_sum_pallas(xr_flat, x_flat, *, lane, max_block_rows, num_parallel):
    n = x_flat.shape[0]
    rows_full = n // lane
    rows_per_core = rows_full // num_parallel

    # Block rows: as large as possible (amortise per-step overhead), but shrink
    # when the input is modest so the un-tiled tail stays a small fraction, and
    # keep it a multiple of 16 (packed-sublane tile for bf16 inputs).
    row_tile = min(max_block_rows, rows_per_core)
    if rows_per_core // max(row_tile, 1) < 4:
        row_tile = rows_per_core // 4
    row_tile = max(16, (row_tile // 16) * 16)

    steps = rows_per_core // row_tile
    rows_kernel = num_parallel * steps * row_tile      # rows covered by grid
    n_kernel = rows_kernel * lane
    n_lane_aligned = rows_full * lane

    if n_lane_aligned == n:
        # Pure reshape of the full flat arrays -- no padding, no copy.
        xr2 = xr_flat.reshape(rows_full, lane)
        x2 = x_flat.reshape(rows_full, lane)
    else:
        # TODO(synk): for non-lane-aligned sizes this prefix slice may be
        # materialised by XLA before the custom call; in-kernel tail masking
        # via a scalar-prefetched element count would make it fully zero-copy.
        xr2 = xr_flat[:n_lane_aligned].reshape(rows_full, lane)
        x2 = x_flat[:n_lane_aligned].reshape(rows_full, lane)

    partials = pl.pallas_call(
        mse_sum_kernel,
        out_shape=jax.ShapeDtypeStruct((num_parallel * 8, lane), jnp.float32),
        grid_spec=pltpu.PrefetchScalarGridSpec(
            num_scalar_prefetch=0,
            grid=(num_parallel, steps),
            in_specs=[
                pl.BlockSpec((row_tile, lane), lambda p, s: (p * steps + s, 0)),
                pl.BlockSpec((row_tile, lane), lambda p, s: (p * steps + s, 0)),
            ],
            out_specs=pl.BlockSpec((8, lane), lambda p, s: (p, 0)),
        ),
        compiler_params=pltpu.CompilerParams(
            # TODO(synk): on v7x verify the size-2 leading axis really lands one
            # p per TensorCore; if not, switch it to pltpu.CORE_PARALLEL.
            dimension_semantics=("parallel", "arbitrary"),
            vmem_limit_bytes=32 * 1024 * 1024,
        ),
    )(xr2, x2)

    # Ragged tail: rows beyond the grid coverage plus the sub-lane remainder,
    # strictly fewer than num_parallel*row_tile*lane + lane elements.  The
    # slice fuses into this XLA reduction (together with the partials sum and
    # the KLD term in the caller), so no extra HBM buffer is written.
    tail_xr = xr_flat[n_kernel:].astype(jnp.float32)
    tail_x = x_flat[n_kernel:].astype(jnp.float32)
    diff_tail = tail_xr - tail_x
    return jnp.sum(partials) + jnp.sum(diff_tail * diff_tail)


def custom_loss(x_recon, x, mu, logvar, *, lane=1024, max_block_rows=1024,
                num_parallel=None, min_kernel_elems=128 * 1024):
    """Pallas equivalent of CustomLoss.forward: sum-MSE + KLD."""
    if num_parallel is None:
        num_parallel = _default_num_parallel()

    # KLD is O(B*Z) (trivial) -> plain JAX; the kernel only pipelines the two
    # large reconstruction tensors.
    mu32 = mu.astype(jnp.float32)
    lv32 = logvar.astype(jnp.float32)
    loss_kld = -0.5 * jnp.sum(1.0 + lv32 - mu32 * mu32 - jnp.exp(lv32))

    xr_flat = x_recon.reshape(-1)
    x_flat = x.reshape(-1)
    n = x_flat.shape[0]

    # Small (or empty) inputs: one fused XLA expression beats padding + a
    # pallas dispatch + a follow-on reduce.
    if n < max(min_kernel_elems, num_parallel * 16 * lane):
        diff = xr_flat.astype(jnp.float32) - x_flat.astype(jnp.float32)
        return jnp.sum(diff * diff) + loss_kld

    loss_mse = _mse_sum_pallas(xr_flat, x_flat, lane=lane,
                               max_block_rows=max_block_rows,
                               num_parallel=num_parallel)
    return loss_mse + loss_kld


if __name__ == "__main__":
    key = jax.random.PRNGKey(0)

    def reference(x_recon, x, mu, logvar):
        mse = jnp.sum((x_recon.astype(jnp.float32) - x.astype(jnp.float32)) ** 2)
        kld = -0.5 * jnp.sum(1.0 + logvar - mu ** 2 - jnp.exp(logvar))
        return mse + kld

    def make_case(k, shape, z):
        k1, k2, k3, k4 = jax.random.split(k, 4)
        b = shape[0]
        x = jax.random.normal(k1, shape, dtype=jnp.float32)
        x_recon = jax.random.normal(k2, shape, dtype=jnp.float32)
        mu = jax.random.normal(k3, (b, z), dtype=jnp.float32)
        logvar = 0.1 * jax.random.normal(k4, (b, z), dtype=jnp.float32)
        return x_recon, x, mu, logvar

    cases = [
        # Canonical small VAE-like shapes -> fused plain-JAX fallback path.
        ((2, 4, 16, 16), 32),
        # Large enough for the Pallas path, lane-aligned (empty tail).
        ((2, 3, 160, 160), 32),
        # Large and NOT lane-aligned -> Pallas prefix + plain-JAX ragged tail.
        ((3, 3, 121, 123), 32),
    ]

    for i, (shape, z) in enumerate(cases):
        key, sub = jax.random.split(key)
        x_recon, x, mu, logvar = make_case(sub, shape, z)
        loss = jax.block_until_ready(custom_loss(x_recon, x, mu, logvar))
        ref = jax.block_until_ready(reference(x_recon, x, mu, logvar))
        assert jnp.allclose(loss, ref, rtol=1e-4, atol=1e-2), (i, shape, loss, ref)

    print("KERNEL_OK")
</pallas_src>

<mosaic_0001>
module attributes {stable_mosaic.version = 11 : i64} {
  func.func @mse_sum_kernel(%arg0: i32, %arg1: i32, %arg2: memref<32x1024xf32, #tpu.memory_space<vmem>>, %arg3: memref<32x1024xf32, #tpu.memory_space<vmem>>, %arg4: memref<8x1024xf32, #tpu.memory_space<vmem>>) attributes {dimension_semantics = [#tpu.dimension_semantics<parallel>, #tpu.dimension_semantics<arbitrary>], iteration_bounds = array<i64: 1, 4>, scalar_prefetch = 0 : i64, scratch_operands = 0 : i64, tpu.core_type = #tpu.core_type<tc>, window_params = [{transform_indices = @transform_0, window_bounds = array<i64: 32, 1024>}, {transform_indices = @transform_1, window_bounds = array<i64: 32, 1024>}, {transform_indices = @transform_2, window_bounds = array<i64: 8, 1024>}]} {
    %c0_i32 = arith.constant 0 : i32
    %0 = arith.cmpi eq, %arg1, %c0_i32 : i32
    %1 = arith.extui %0 : i1 to i32
    %c0_i32_0 = arith.constant 0 : i32
    %2 = arith.cmpi ne, %1, %c0_i32_0 : i32
    scf.if %2 {
      %cst_8 = arith.constant 0.000000e+00 : f32
      %12 = vector.broadcast %cst_8 : f32 to vector<8x1024xf32>
      %c0_9 = arith.constant 0 : index
      %c0_10 = arith.constant 0 : index
      %13 = vector.load %arg4[%c0_9, %c0_10] : memref<8x1024xf32, #tpu.memory_space<vmem>>, vector<8x1024xf32>
      tpu.vector_store %arg4[%c0_9, %c0_10], %12 {strides = array<i32>} : memref<8x1024xf32, #tpu.memory_space<vmem>>, vector<8x1024xf32>,
    } else {
    }
    %c0 = arith.constant 0 : index
    %c0_1 = arith.constant 0 : index
    %3 = vector.load %arg2[%c0, %c0_1] : memref<32x1024xf32, #tpu.memory_space<vmem>>, vector<32x1024xf32>
    %c0_2 = arith.constant 0 : index
    %c0_3 = arith.constant 0 : index
    %4 = vector.load %arg3[%c0_2, %c0_3] : memref<32x1024xf32, #tpu.memory_space<vmem>>, vector<32x1024xf32>
    %5 = arith.subf %3, %4 : vector<32x1024xf32>
    %6 = arith.mulf %5, %5 : vector<32x1024xf32>
    %c0_4 = arith.constant 0 : index
    %c0_5 = arith.constant 0 : index
    %7 = vector.load %arg4[%c0_4, %c0_5] : memref<8x1024xf32, #tpu.memory_space<vmem>>, vector<8x1024xf32>
    %8 = vector.shape_cast %6 : vector<32x1024xf32> to vector<4x8x1024xf32>
    %cst = arith.constant dense<0.000000e+00> : vector<8x1024xf32>
    %9 = vector.multi_reduction <add>, %8, %cst [0] : vector<4x8x1024xf32> to vector<8x1024xf32>
    %10 = arith.addf %7, %9 : vector<8x1024xf32>
    %c0_6 = arith.constant 0 : index
    %c0_7 = arith.constant 0 : index
    %11 = vector.load %arg4[%c0_6, %c0_7] : memref<8x1024xf32, #tpu.memory_space<vmem>>, vector<8x1024xf32>
    tpu.vector_store %arg4[%c0_6, %c0_7], %10 {strides = array<i32>} : memref<8x1024xf32, #tpu.memory_space<vmem>>, vector<8x1024xf32>,
    return
  }
  func.func @transform_0(%arg0: i32, %arg1: i32) -> (i32, i32) {
    %c4_i32 = arith.constant 4 : i32
    %0 = arith.muli %arg0, %c4_i32 : i32
    %1 = arith.addi %0, %arg1 : i32
    %c0_i32 = arith.constant 0 : i32
    %c0_i32_0 = arith.constant 0 : i32
    return %1, %c0_i32 : i32, i32
  }
  func.func @transform_1(%arg0: i32, %arg1: i32) -> (i32, i32) {
    %c4_i32 = arith.constant 4 : i32
    %0 = arith.muli %arg0, %c4_i32 : i32
    %1 = arith.addi %0, %arg1 : i32
    %c0_i32 = arith.constant 0 : i32
    %c0_i32_0 = arith.constant 0 : i32
    return %1, %c0_i32 : i32, i32
  }
  func.func @transform_2(%arg0: i32, %arg1: i32) -> (i32, i32) {
    %c0_i32 = arith.constant 0 : i32
    %c0_i32_0 = arith.constant 0 : i32
    return %arg0, %c0_i32 : i32, i32
  }
}

</mosaic_0001>

<llo_original>
// kernel: tpu_custom_call.1
$region0: #{tpu_custom_call.1}
  #allocation0 [shape = 'u32[]', space=smem, size = 0x4, offset = 0x4, fixed_abs, tag = 'smem constant byte address 0x4 - core index']
  #allocation1 [shape = 'u32[72,128]{1,0:T(1,128)}', space=vmem, size = 0x9000, scoped, tag = 'internal scratch']
  %s0 = inlined_call_operand.hbm [shape: f32[150,1024], index: 0, kind: input, shape index: {}]
  %s1 = inlined_call_operand.hbm [shape: f32[150,1024], index: 1, kind: input, shape index: {}]
  %s2 = inlined_call_operand.hbm [shape: f32[8,1024], index: 2, kind: output, shape index: {}]
  %s3 = sld [smem:[#allocation0]]
  $region53: #{tpu_custom_call.1} parent=0
    _
  %s5 = ssub.s32 1, %s3
  %s6 = scalar_select 0, %s5, %s3
  $region1: #{tpu_custom_call.1} parent=0
    #allocation2 [shape = 'u8[262144]{0}', space=vmem, size = 0x40000, scoped, tag = 'input window, operand 0']
    #allocation3 [shape = 's32[2]{0}', space=sflag, size = 0x8, scoped, tag = 'scoped memory for tpu_custom_call.1']
    #allocation4 [shape = 's32[2]{0}', space=sflag, size = 0x8, scoped, tag = 'scoped memory for tpu_custom_call.1']
    #allocation5 [shape = 'u8[262144]{0}', space=vmem, size = 0x40000, scoped, tag = 'input window, operand 1']
    #allocation6 [shape = 's32[2]{0}', space=sflag, size = 0x8, scoped, tag = 'scoped memory for tpu_custom_call.1']
    #allocation7 [shape = 'u8[32768]{0}', space=vmem, size = 0x8000, scoped, tag = 'output window, operand 0, single buffered']
    %7 = vsyncpa [#allocation3], 0
    %s8 = scalar_lea.sflag [#allocation3], 1
    %9 = vsyncpa %s8, 0
    %10 = vsyncpa [#allocation6], 0
    %s11 = scalar_lea.sflag [#allocation6], 1
    %12 = vsyncpa %s11, 0
    %13 = vsyncpa [#allocation4], 0
    loop: start=0, step=1, limit=6
    $region2: #{tpu_custom_call.1} parent=1 // loop_pre_header
      _
    $region3: #{tpu_custom_call.1} parent=1 // loop_header
      %s15 = sphi 0, %s19
      %p16 = scmp.ge.s32.totalorder %s15, 6
      %s22 = sphi 0, %s34
      %s23 = sphi 0, %s30
      %s24 = sphi 0, %s22
      %s25 = sphi 0, %s23
      %s26 = sphi 0, %s24
      %s27 = sphi 0, %s25
      %s41 = sphi 0, %s43
      %s44 = sphi 0, %s41
      %s45 = sphi 0, %s44
      %s61 = sphi 0, %s45
      %s71 = sphi 0, %s73
      %s74 = sphi 0, %s71
      %s75 = sphi 0, %s74
      %s91 = sphi 0, %s75
      %s97 = sphi 0, %s99
      %s100 = sphi 0, %s97
      %s101 = sphi 0, %s100
      %s117 = sphi 0, %s101
    $region4: #{tpu_custom_call.1} parent=1 // loop_header_branch
      %18 = sbr.rel (%p16) target = $region8
    $region5: #{tpu_custom_call.1} parent=1 // loop_body
      %s20 = ssub.s32 %s15, 1
      %s21 = ssub.s32 %s15, 2
      %s28 = sadd.s32 1, %s23
      %p29 = scmp.ge.s32.totalorder %s28, 4
      %s30 = scalar_select %p29, 0, %s28
      %s31 = sadd.s32 1, %s22
      %s32 = scalar_select %p29, %s31, %s22
      %p33 = scmp.ge.s32.totalorder %s32, 1
      %s34 = scalar_select %p33, 0, %s32
      %s35 = smul.u32 %s22, 4
      %s36 = sadd.s32 %s35, %s23
      %s37 = smul.u32 %s34, 4
      %s38 = sadd.s32 %s37, %s30
      %s39 = ssub.s32 %s36, %s38
      %p40 = scmp.eq.s32.totalorder %s39, 0
      %s42 = sadd.s32 %s41, 1
      %s43 = scalar_select %p40, %s41, %s42
      %p46 = pneg %p40
      %p47 = scmp.eq.s32.totalorder %s15, 3
      %p48 = por %p46, %p47
      %p49 = scmp.ne.s32.totalorder %s41, %s44
      %p50 = scmp.eq.s32.totalorder %s15, 0
      %p51 = por %p49, %p50
      %p52 = scmp.ne.s32.totalorder %s41, %s44
      %p53 = scmp.eq.s32.totalorder %s20, 3
      %p54 = por %p52, %p53
      %p55 = scmp.ne.s32.totalorder %s44, %s45
      %p56 = scmp.eq.s32.totalorder %s20, 0
      %p57 = por %p55, %p56
      %p58 = scmp.ne.s32.totalorder %s44, %s45
      %p59 = scmp.eq.s32.totalorder %s21, 3
      %p60 = por %p58, %p59
      %p62 = scmp.ne.s32.totalorder %s45, %s61
      %p63 = scmp.eq.s32.totalorder %s21, 0
      %p64 = por %p62, %p63
      %s65 = smul.u32 %s22, 4
      %s66 = sadd.s32 %s65, %s23
      %s67 = smul.u32 %s34, 4
      %s68 = sadd.s32 %s67, %s30
      %s69 = ssub.s32 %s66, %s68
      %p70 = scmp.eq.s32.totalorder %s69, 0
      %s72 = sadd.s32 %s71, 1
      %s73 = scalar_select %p70, %s71, %s72
      %p76 = pneg %p70
      %p77 = scmp.eq.s32.totalorder %s15, 3
      %p78 = por %p76, %p77
      %p79 = scmp.ne.s32.totalorder %s71, %s74
      %p80 = scmp.eq.s32.totalorder %s15, 0
      %p81 = por %p79, %p80
      %p82 = scmp.ne.s32.totalorder %s71, %s74
      %p83 = scmp.eq.s32.totalorder %s20, 3
      %p84 = por %p82, %p83
      %p85 = scmp.ne.s32.totalorder %s74, %s75
      %p86 = scmp.eq.s32.totalorder %s20, 0
      %p87 = por %p85, %p86
      %p88 = scmp.ne.s32.totalorder %s74, %s75
      %p89 = scmp.eq.s32.totalorder %s21, 3
      %p90 = por %p88, %p89
      %p92 = scmp.ne.s32.totalorder %s75, %s91
      %p93 = scmp.eq.s32.totalorder %s21, 0
      %p94 = por %p92, %p93
      %s95 = ssub.s32 %s22, %s34
      %p96 = scmp.eq.s32.totalorder %s95, 0
      %s98 = sadd.s32 %s97, 1
      %s99 = scalar_select %p96, %s97, %s98
      %p102 = pneg %p96
      %p103 = scmp.eq.s32.totalorder %s15, 3
      %p104 = por %p102, %p103
      %p105 = scmp.ne.s32.totalorder %s97, %s100
      %p106 = scmp.eq.s32.totalorder %s15, 0
      %p107 = por %p105, %p106
      %p108 = scmp.ne.s32.totalorder %s97, %s100
      %p109 = scmp.eq.s32.totalorder %s20, 3
      %p110 = por %p108, %p109
      %p111 = scmp.ne.s32.totalorder %s100, %s101
      %p112 = scmp.eq.s32.totalorder %s20, 0
      %p113 = por %p111, %p112
      %p114 = scmp.ne.s32.totalorder %s100, %s101
      %p115 = scmp.eq.s32.totalorder %s21, 3
      %p116 = por %p114, %p115
      %p118 = scmp.ne.s32.totalorder %s101, %s117
      %p119 = scmp.eq.s32.totalorder %s21, 0
      %p120 = por %p118, %p119
      %p121 = scmp.le.s32.totalorder 1, %s15
      %p122 = scmp.lt.s32.totalorder %s15, 5
      %p123 = pnand %p121, %p122
      %p124 = pneg %p123
      // Predicated region
      $region9: #{tpu_custom_call.1} parent=5 // pred_check
        _
      $region10: #{tpu_custom_call.1} parent=5 // pred_check_branch
        %126 = sbr.rel (%p123) target = $region12
      $region11: #{tpu_custom_call.1} parent=5 // pred_region
        %s127 = ssub.s32 %s15, 1
      $region12: #{tpu_custom_call.1} parent=5 // pred_fallthru
        _
      %p128 = scmp.lt.s32.totalorder %s15, 4
      // Predicated region
      $region13: #{tpu_custom_call.1} parent=5 // pred_check
        %p129 = pneg %p128
      $region14: #{tpu_custom_call.1} parent=5 // pred_check_branch
        %131 = sbr.rel (%p129) target = $region16
      $region15: #{tpu_custom_call.1} parent=5 // pred_region
        // Predicated region
        $region17: #{tpu_custom_call.1} parent=15 // pred_check
          %p132 = pneg %p51
        $region18: #{tpu_custom_call.1} parent=15 // pred_check_branch
          %134 = sbr.rel (%p132) target = $region20
        $region19: #{tpu_custom_call.1} parent=15 // pred_region
          %s135 = sand.u32 %s41, 1
          %s136 = scalar_lea.sflag [#allocation3], %s135
          %s137 = sand.u32 %s41, 1
          %s138 = smul.addr %s137, 256
          %s139 = scalar_lea.vmem [#allocation2], %s138
          %s140 = smul.u32 %s22, 4
          %s141 = sadd.s32 %s140, %s23
          %s142 = smul.u32 4, %s141
          %s143 = ssub.s32 19, %s142
          %p144 = scmp.lt.s32.totalorder %s143, 4
          %s145 = scalar_select %p144, %s143, 4
          %s146 = smul.u32 8, %s145
          %s147 = smul.u32 %s146, 8
          %s148 = ssub.s32 256, %s147
          %s149 = sshll.u32 %s148, 4
          %150 = vsyncadd %s136, %s149
          %p151 = scmp.ne.s32.totalorder 0, %s147
          %s152 = smul.addr %s142, 8
          %s153 = smul.addr %s152, 8
          %s154 = scalar_lea.hbm %s0, %s153
          %s155 = smul.u32 64, %s145
          %s156 = sshll.u32 %s154, 4
          %s157 = int_to_ptr.hbm [resolvable:$true] %s156
          %s158 = sshll.u32 %s139, 4
          %s159 = int_to_ptr.vmem [resolvable:$true] %s158
          %s160 = sshll.u32 %s155, 4
          %164 = dma.hbm_to_vmem [thread:$0]  (%p151), %s157, %s160, %s159, %s136, 1024, 1024, 64
        $region20: #{tpu_custom_call.1} parent=15 // pred_fallthru
          _
        // Predicated region
        $region21: #{tpu_custom_call.1} parent=15 // pred_check
          %p165 = pneg %p81
        $region22: #{tpu_custom_call.1} parent=15 // pred_check_branch
          %167 = sbr.rel (%p165) target = $region24
        $region23: #{tpu_custom_call.1} parent=15 // pred_region
          %s168 = sand.u32 %s71, 1
          %s169 = scalar_lea.sflag [#allocation6], %s168
          %s170 = sand.u32 %s71, 1
          %s171 = smul.addr %s170, 256
          %s172 = scalar_lea.vmem [#allocation5], %s171
          %s173 = smul.u32 %s22, 4
          %s174 = sadd.s32 %s173, %s23
          %s175 = smul.u32 4, %s174
          %s176 = ssub.s32 19, %s175
          %p177 = scmp.lt.s32.totalorder %s176, 4
          %s178 = scalar_select %p177, %s176, 4
          %s179 = smul.u32 8, %s178
          %s180 = smul.u32 %s179, 8
          %s181 = ssub.s32 256, %s180
          %s182 = sshll.u32 %s181, 4
          %183 = vsyncadd %s169, %s182
          %p184 = scmp.ne.s32.totalorder 0, %s180
          %s185 = smul.addr %s175, 8
          %s186 = smul.addr %s185, 8
          %s187 = scalar_lea.hbm %s1, %s186
          %s188 = smul.u32 64, %s178
          %s189 = sshll.u32 %s187, 4
          %s190 = int_to_ptr.hbm [resolvable:$true] %s189
          %s191 = sshll.u32 %s172, 4
          %s192 = int_to_ptr.vmem [resolvable:$true] %s191
          %s193 = sshll.u32 %s188, 4
          %197 = dma.hbm_to_vmem [thread:$0]  (%p184), %s190, %s193, %s192, %s169, 1024, 1024, 64
        $region24: #{tpu_custom_call.1} parent=15 // pred_fallthru
          _
      $region16: #{tpu_custom_call.1} parent=5 // pred_fallthru
        _
      %p198 = scmp.le.s32.totalorder 1, %s15
      %p199 = scmp.lt.s32.totalorder %s15, 5
      %p200 = pnand %p198, %p199
      %p201 = pneg %p200
      // Predicated region
      $region25: #{tpu_custom_call.1} parent=5 // pred_check
        _
      $region26: #{tpu_custom_call.1} parent=5 // pred_check_branch
        %203 = sbr.rel (%p200) target = $region28
      $region27: #{tpu_custom_call.1} parent=5 // pred_region
        %s204 = ssub.s32 %s15, 1
        %s205 = sand.u32 %s44, 1
        %s206 = scalar_lea.sflag [#allocation3], %s205
        %s207 = sand.u32 %s44, 1
        %s208 = smul.addr %s207, 256
        %s209 = scalar_lea.vmem [#allocation2], %s208
        // Predicated region
        $region29: #{tpu_custom_call.1} parent=27 // pred_check
          %p210 = pneg %p57
        $region30: #{tpu_custom_call.1} parent=27 // pred_check_branch
          %212 = sbr.rel (%p210) target = $region32
        $region31: #{tpu_custom_call.1} parent=27 // pred_region
          %214 = dma.done %s206, 4096
        $region32: #{tpu_custom_call.1} parent=27 // pred_fallthru
          _
        %s215 = sand.u32 %s74, 1
        %s216 = scalar_lea.sflag [#allocation6], %s215
        %s217 = sand.u32 %s74, 1
        %s218 = smul.addr %s217, 256
        %s219 = scalar_lea.vmem [#allocation5], %s218
        // Predicated region
        $region33: #{tpu_custom_call.1} parent=27 // pred_check
          %p220 = pneg %p87
        $region34: #{tpu_custom_call.1} parent=27 // pred_check_branch
          %222 = sbr.rel (%p220) target = $region36
        $region35: #{tpu_custom_call.1} parent=27 // pred_region
          %224 = dma.done %s216, 4096
        $region36: #{tpu_custom_call.1} parent=27 // pred_fallthru
          _
        %s225 = sand.u32 %s44, 1
        %s226 = scalar_lea.sflag [#allocation3], %s225
        %s227 = sand.u32 %s44, 1
        %s228 = smul.addr %s227, 256
        %s229 = scalar_lea.vmem [#allocation2], %s228
        %p230 = pneg %p57
        %p231 = pneg %p54
        %s232 = sand.u32 %s74, 1
        %s233 = scalar_lea.sflag [#allocation6], %s232
        %s234 = sand.u32 %s74, 1
        %s235 = smul.addr %s234, 256
        %s236 = scalar_lea.vmem [#allocation5], %s235
        %p237 = pneg %p87
        %p238 = pneg %p84
        %p239 = pneg %p113
        %p240 = pneg %p110
        %s241 = smul.u32 %s24, 4
        %s242 = sadd.s32 %s241, %s25
        %s243 = smul.u32 4, %s242
        %s244 = ssub.s32 19, %s243
        %p245 = scmp.lt.s32.totalorder %s244, 4
        %s246 = scalar_select %p245, %s244, 4
        %s247 = smul.u32 8, %s246
        %s248 = smul.u32 %s247, 8
        %s249 = smul.u32 %s24, 4
        %s250 = sadd.s32 %s249, %s25
        %s251 = smul.u32 4, %s250
        %s252 = ssub.s32 19, %s251
        %p253 = scmp.lt.s32.totalorder %s252, 4
        %s254 = scalar_select %p253, %s252, 4
        %s255 = smul.u32 8, %s254
        %s256 = smul.u32 %s255, 8
        %p257 = scmp.eq.s32.totalorder %s25, 0
        // Predicated region
        $region37: #{tpu_custom_call.1} parent=27 // pred_check
          %p258 = pneg %p257
        $region38: #{tpu_custom_call.1} parent=27 // pred_check_branch
          %260 = sbr.rel (%p258) target = $region40
        $region39: #{tpu_custom_call.1} parent=27 // pred_region
          %261 = vst [vmem:[#allocation7] sm:$0xff] 0.0
          %262 = vst [vmem:[#allocation7 + $0x8] sm:$0xff] 0.0
          %263 = vst [vmem:[#allocation7 + $0x10] sm:$0xff] 0.0
          %264 = vst [vmem:[#allocation7 + $0x18] sm:$0xff] 0.0
          %265 = vst [vmem:[#allocation7 + $0x20] sm:$0xff] 0.0
          %266 = vst [vmem:[#allocation7 + $0x28] sm:$0xff] 0.0
          %267 = vst [vmem:[#allocation7 + $0x30] sm:$0xff] 0.0
          %268 = vst [vmem:[#allocation7 + $0x38] sm:$0xff] 0.0
        $region40: #{tpu_custom_call.1} parent=27 // pred_fallthru
          _
        %v269 = vld [vmem:[%s209] sm:$0xff]
        %v270 = vld [vmem:[%s209 + $0x8] sm:$0xff]
        %v271 = vld [vmem:[%s209 + $0x10] sm:$0xff]
        %v272 = vld [vmem:[%s209 + $0x18] sm:$0xff]
        %v273 = vld [vmem:[%s209 + $0x20] sm:$0xff]
        %v274 = vld [vmem:[%s209 + $0x28] sm:$0xff]
        %v275 = vld [vmem:[%s209 + $0x30] sm:$0xff]
        %v276 = vld [vmem:[%s209 + $0x38] sm:$0xff]
        %v277 = vld [vmem:[%s209 + $0x40] sm:$0xff]
        %v278 = vld [vmem:[%s209 + $0x48] sm:$0xff]
        %v279 = vld [vmem:[%s209 + $0x50] sm:$0xff]
        %v280 = vld [vmem:[%s209 + $0x58] sm:$0xff]
        %v281 = vld [vmem:[%s209 + $0x60] sm:$0xff]
        %v282 = vld [vmem:[%s209 + $0x68] sm:$0xff]
        %v283 = vld [vmem:[%s209 + $0x70] sm:$0xff]
        %v284 = vld [vmem:[%s209 + $0x78] sm:$0xff]
        %v285 = vld [vmem:[%s209 + $0x80] sm:$0xff]
        %v286 = vld [vmem:[%s209 + $0x88] sm:$0xff]
        %v287 = vld [vmem:[%s209 + $0x90] sm:$0xff]
        %v288 = vld [vmem:[%s209 + $0x98] sm:$0xff]
        %v289 = vld [vmem:[%s209 + $0xa0] sm:$0xff]
        %v290 = vld [vmem:[%s209 + $0xa8] sm:$0xff]
        %v291 = vld [vmem:[%s209 + $0xb0] sm:$0xff]
        %v292 = vld [vmem:[%s209 + $0xb8] sm:$0xff]
        %v293 = vld [vmem:[%s209 + $0xc0] sm:$0xff]
        %v294 = vld [vmem:[%s209 + $0xc8] sm:$0xff]
        %v295 = vld [vmem:[%s209 + $0xd0] sm:$0xff]
        %v296 = vld [vmem:[%s209 + $0xd8] sm:$0xff]
        %v297 = vld [vmem:[%s209 + $0xe0] sm:$0xff]
        %v298 = vld [vmem:[%s209 + $0xe8] sm:$0xff]
        %v299 = vld [vmem:[%s209 + $0xf0] sm:$0xff]
        %v300 = vld [vmem:[%s209 + $0xf8] sm:$0xff]
        %v301 = vld [vmem:[%s219] sm:$0xff]
        %v302 = vld [vmem:[%s219 + $0x8] sm:$0xff]
        %v303 = vld [vmem:[%s219 + $0x10] sm:$0xff]
        %v304 = vld [vmem:[%s219 + $0x18] sm:$0xff]
        %v305 = vld [vmem:[%s219 + $0x20] sm:$0xff]
        %v306 = vld [vmem:[%s219 + $0x28] sm:$0xff]
        %v307 = vld [vmem:[%s219 + $0x30] sm:$0xff]
        %v308 = vld [vmem:[%s219 + $0x38] sm:$0xff]
        %v309 = vld [vmem:[%s219 + $0x40] sm:$0xff]
        %v310 = vld [vmem:[%s219 + $0x48] sm:$0xff]
        %v311 = vld [vmem:[%s219 + $0x50] sm:$0xff]
        %v312 = vld [vmem:[%s219 + $0x58] sm:$0xff]
        %v313 = vld [vmem:[%s219 + $0x60] sm:$0xff]
        %v314 = vld [vmem:[%s219 + $0x68] sm:$0xff]
        %v315 = vld [vmem:[%s219 + $0x70] sm:$0xff]
        %v316 = vld [vmem:[%s219 + $0x78] sm:$0xff]
        %v317 = vld [vmem:[%s219 + $0x80] sm:$0xff]
        %v318 = vld [vmem:[%s219 + $0x88] sm:$0xff]
        %v319 = vld [vmem:[%s219 + $0x90] sm:$0xff]
        %v320 = vld [vmem:[%s219 + $0x98] sm:$0xff]
        %v321 = vld [vmem:[%s219 + $0xa0] sm:$0xff]
        %v322 = vld [vmem:[%s219 + $0xa8] sm:$0xff]
        %v323 = vld [vmem:[%s219 + $0xb0] sm:$0xff]
        %v324 = vld [vmem:[%s219 + $0xb8] sm:$0xff]
        %v325 = vld [vmem:[%s219 + $0xc0] sm:$0xff]
        %v326 = vld [vmem:[%s219 + $0xc8] sm:$0xff]
        %v327 = vld [vmem:[%s219 + $0xd0] sm:$0xff]
        %v328 = vld [vmem:[%s219 + $0xd8] sm:$0xff]
        %v329 = vld [vmem:[%s219 + $0xe0] sm:$0xff]
        %v330 = vld [vmem:[%s219 + $0xe8] sm:$0xff]
        %v331 = vld [vmem:[%s219 + $0xf0] sm:$0xff]
        %v332 = vld [vmem:[%s219 + $0xf8] sm:$0xff]
        %v333 = vsub.f32 %v269, %v301
        %v334 = vsub.f32 %v270, %v302
        %v335 = vsub.f32 %v271, %v303
        %v336 = vsub.f32 %v272, %v304
        %v337 = vsub.f32 %v273, %v305
        %v338 = vsub.f32 %v274, %v306
        %v339 = vsub.f32 %v275, %v307
        %v340 = vsub.f32 %v276, %v308
        %v341 = vsub.f32 %v277, %v309
        %v342 = vsub.f32 %v278, %v310
        %v343 = vsub.f32 %v279, %v311
        %v344 = vsub.f32 %v280, %v312
        %v345 = vsub.f32 %v281, %v313
        %v346 = vsub.f32 %v282, %v314
        %v347 = vsub.f32 %v283, %v315
        %v348 = vsub.f32 %v284, %v316
        %v349 = vsub.f32 %v285, %v317
        %v350 = vsub.f32 %v286, %v318
        %v351 = vsub.f32 %v287, %v319
        %v352 = vsub.f32 %v288, %v320
        %v353 = vsub.f32 %v289, %v321
        %v354 = vsub.f32 %v290, %v322
        %v355 = vsub.f32 %v291, %v323
        %v356 = vsub.f32 %v292, %v324
        %v357 = vsub.f32 %v293, %v325
        %v358 = vsub.f32 %v294, %v326
        %v359 = vsub.f32 %v295, %v327
        %v360 = vsub.f32 %v296, %v328
        %v361 = vsub.f32 %v297, %v329
        %v362 = vsub.f32 %v298, %v330
        %v363 = vsub.f32 %v299, %v331
        %v364 = vsub.f32 %v300, %v332
        %v365 = vmul.f32 %v333, %v333
        %v366 = vmul.f32 %v334, %v334
        %v367 = vmul.f32 %v335, %v335
        %v368 = vmul.f32 %v336, %v336
        %v369 = vmul.f32 %v337, %v337
        %v370 = vmul.f32 %v338, %v338
        %v371 = vmul.f32 %v339, %v339
        %v372 = vmul.f32 %v340, %v340
        %v373 = vmul.f32 %v341, %v341
        %v374 = vmul.f32 %v342, %v342
        %v375 = vmul.f32 %v343, %v343
        %v376 = vmul.f32 %v344, %v344
        %v377 = vmul.f32 %v345, %v345
        %v378 = vmul.f32 %v346, %v346
        %v379 = vmul.f32 %v347, %v347
        %v380 = vmul.f32 %v348, %v348
        %v381 = vmul.f32 %v349, %v349
        %v382 = vmul.f32 %v350, %v350
        %v383 = vmul.f32 %v351, %v351
        %v384 = vmul.f32 %v352, %v352
        %v385 = vmul.f32 %v353, %v353
        %v386 = vmul.f32 %v354, %v354
        %v387 = vmul.f32 %v355, %v355
        %v388 = vmul.f32 %v356, %v356
        %v389 = vmul.f32 %v357, %v357
        %v390 = vmul.f32 %v358, %v358
        %v391 = vmul.f32 %v359, %v359
        %v392 = vmul.f32 %v360, %v360
        %v393 = vmul.f32 %v361, %v361
        %v394 = vmul.f32 %v362, %v362
        %v395 = vmul.f32 %v363, %v363
        %v396 = vmul.f32 %v364, %v364
        %v397 = vld [vmem:[#allocation7] sm:$0xff]
        %v398 = vld [vmem:[#allocation7 + $0x8] sm:$0xff]
        %v399 = vld [vmem:[#allocation7 + $0x10] sm:$0xff]
        %v400 = vld [vmem:[#allocation7 + $0x18] sm:$0xff]
        %v401 = vld [vmem:[#allocation7 + $0x20] sm:$0xff]
        %v402 = vld [vmem:[#allocation7 + $0x28] sm:$0xff]
        %v403 = vld [vmem:[#allocation7 + $0x30] sm:$0xff]
        %v404 = vld [vmem:[#allocation7 + $0x38] sm:$0xff]
        %v405 = vadd.f32 %v365, %v373
        %v406 = vadd.f32 %v405, %v381
        %v407 = vadd.f32 %v406, %v389
        %v408 = vadd.f32 %v366, %v374
        %v409 = vadd.f32 %v408, %v382
        %v410 = vadd.f32 %v409, %v390
        %v411 = vadd.f32 %v367, %v375
        %v412 = vadd.f32 %v411, %v383
        %v413 = vadd.f32 %v412, %v391
        %v414 = vadd.f32 %v368, %v376
        %v415 = vadd.f32 %v414, %v384
        %v416 = vadd.f32 %v415, %v392
        %v417 = vadd.f32 %v369, %v377
        %v418 = vadd.f32 %v417, %v385
        %v419 = vadd.f32 %v418, %v393
        %v420 = vadd.f32 %v370, %v378
        %v421 = vadd.f32 %v420, %v386
        %v422 = vadd.f32 %v421, %v394
        %v423 = vadd.f32 %v371, %v379
        %v424 = vadd.f32 %v423, %v387
        %v425 = vadd.f32 %v424, %v395
        %v426 = vadd.f32 %v372, %v380
        %v427 = vadd.f32 %v426, %v388
        %v428 = vadd.f32 %v427, %v396
        %v429 = vadd.f32 %v397, %v407
        %v430 = vadd.f32 %v398, %v410
        %v431 = vadd.f32 %v399, %v413
        %v432 = vadd.f32 %v400, %v416
        %v433 = vadd.f32 %v401, %v419
        %v434 = vadd.f32 %v402, %v422
        %v435 = vadd.f32 %v403, %v425
        %v436 = vadd.f32 %v404, %v428
        %437 = vst [vmem:[#allocation7] sm:$0xff] %v429
        %438 = vst [vmem:[#allocation7 + $0x8] sm:$0xff] %v430
        %439 = vst [vmem:[#allocation7 + $0x10] sm:$0xff] %v431
        %440 = vst [vmem:[#allocation7 + $0x18] sm:$0xff] %v432
        %441 = vst [vmem:[#allocation7 + $0x20] sm:$0xff] %v433
        %442 = vst [vmem:[#allocation7 + $0x28] sm:$0xff] %v434
        %443 = vst [vmem:[#allocation7 + $0x30] sm:$0xff] %v435
        %444 = vst [vmem:[#allocation7 + $0x38] sm:$0xff] %v436
        // Predicated region
        $region41: #{tpu_custom_call.1} parent=27 // pred_check
          %p445 = pneg %p110
        $region42: #{tpu_custom_call.1} parent=27 // pred_check_branch
          %447 = sbr.rel (%p445) target = $region44
        $region43: #{tpu_custom_call.1} parent=27 // pred_region
          %449 = vsyncadd [#allocation4], 0
          %s450 = smul.addr %s24, 8
          %s451 = smul.addr %s450, 8
          %s452 = scalar_lea.hbm %s2, %s451
          %s454 = sshll.u32 [#allocation7], 4
          %s455 = int_to_ptr.vmem [resolvable:$true] %s454
          %s456 = sshll.u32 %s452, 4
          %s457 = int_to_ptr.hbm [resolvable:$true] %s456
          %459 = dma.vmem_to_hbm [thread:$0]  %s455, 1024, %s457, [#allocation4]
        $region44: #{tpu_custom_call.1} parent=27 // pred_fallthru
          _
        // Predicated region
        $region45: #{tpu_custom_call.1} parent=27 // pred_check
          %p460 = pneg %p110
        $region46: #{tpu_custom_call.1} parent=27 // pred_check_branch
          %462 = sbr.rel (%p460) target = $region48
        $region47: #{tpu_custom_call.1} parent=27 // pred_region
          %464 = dma.done [#allocation4], 1024
        $region48: #{tpu_custom_call.1} parent=27 // pred_fallthru
          _
      $region28: #{tpu_custom_call.1} parent=5 // pred_fallthru
        _
      %p465 = scmp.le.s32.totalorder 2, %s15
      // Predicated region
      $region49: #{tpu_custom_call.1} parent=5 // pred_check
        %p466 = pneg %p465
      $region50: #{tpu_custom_call.1} parent=5 // pred_check_branch
        %468 = sbr.rel (%p466) target = $region52
      $region51: #{tpu_custom_call.1} parent=5 // pred_region
        %s469 = ssub.s32 %s15, 2
      $region52: #{tpu_custom_call.1} parent=5 // pred_fallthru
        _
    $region6: #{tpu_custom_call.1} parent=1 // loop_footer
      %s19 = sadd.s32 1, %s15
    $region7: #{tpu_custom_call.1} parent=1 // loop_footer_branch
      %14 = sbr.rel target = $region3
    $region8: #{tpu_custom_call.1} parent=1 // loop_exit
      _
    %470 = vsyncpa [#allocation3], 1
    %s471 = scalar_lea.sflag [#allocation3], 1
    %472 = vsyncpa %s471, 1
    %473 = vsyncpa [#allocation6], 1
    %s474 = scalar_lea.sflag [#allocation6], 1
    %475 = vsyncpa %s474, 1
    %476 = vsyncpa [#allocation4], 1
    %s477 = scalar_lea.sflag [#allocation4], 1
    %478 = vsyncpa %s477, 1

</llo_original>
